<compile_context>
chip_gen: v7x
topology: tpu7x:2x2x1
jax: 0.10.0
libtpu: 0.0.40
codegen_flags: <defaults>
</compile_context>

<pallas_src>
import jax
import jax.numpy as jnp
from jax.experimental import pallas as pl
from jax.experimental.pallas import tpu as pltpu


def _round_up(n: int, m: int) -> int:
    return ((n + m - 1) // m) * m


def policy_net_kernel(x_ref, w1t_ref, b1_ref, dw_ref, db_ref, out_ref):
    # x_ref:  (S, TB)   batch on the lane axis (lane-dense)
    # w1t_ref:(H, S)    resident weight (tiny)
    # b1_ref: (H, 1)    resident bias column
    # dw_ref: (H, 1)    w2[:,1] - w2[:,0], precomputed in the wrapper
    # db_ref: (1,)      b2[1] - b2[0], SMEM scalar
    # out_ref:(2, TB)   [p0; p1], batch on the lane axis
    x = x_ref[...]
    w1t = w1t_ref[...]
    s = x.shape[0]                                # static (state_dim = 4)

    # ---- fc1 + ReLU on the VPU: S broadcast multiply-adds (K=4 would waste
    # the MXU at <2% utilization). ------------------------------------------
    acc = b1_ref[...] + w1t[:, 0:1] * x[0:1, :]   # (H, TB)
    for k in range(1, s):                         # unrolled (s == 4)
        acc = acc + w1t[:, k:k + 1] * x[k:k + 1, :]
    h = jnp.maximum(acc, 0.0)                     # (H, TB)

    # ---- fc2 (2 logits) reduced to a single logit difference ----------------
    #   z = l1 - l0 = h . dw + db ;  softmax == [sigmoid(-z), sigmoid(z)]
    z = jnp.sum(h * dw_ref[...], axis=0, keepdims=True) + db_ref[0]   # (1, TB)

    p1 = jax.nn.sigmoid(z)                        # EUP
    p0 = jax.nn.sigmoid(-z)                       # keeps small-prob accuracy
    out_ref[0:1, :] = p0.astype(out_ref.dtype)
    out_ref[1:2, :] = p1.astype(out_ref.dtype)


def policy_net_forward(x, w1, b1, w2, b2, *, block_b=2048):
    """probs = softmax(relu(x @ w1 + b1) @ w2 + b2, axis=1).

    x: (B, state_dim) f32; w1: (state_dim, H); b1: (H,); w2: (H, 2); b2: (2,).
    """
    B, state_dim = x.shape
    hidden = w1.shape[1]
    action_dim = w2.shape[1]
    if action_dim != 2:
        raise NotImplementedError("kernel is specialized for the 2-action CartPole head")

    # Tile selection: minimize pad waste, keep the lane dim a multiple of 128,
    # and give >= 2 grid steps for rollout-sized batches (v7x megacore).
    n_steps = max(1, -(-B // block_b))
    if n_steps < 2 and B >= 256:
        n_steps = 2
    tb = _round_up(-(-B // n_steps), 128)
    bp = tb * n_steps

    # Transposed, lane-dense layouts.
    x_t = x.T                                      # (S, B) — batch on lanes
    if bp != B:
        x_t = jnp.pad(x_t, ((0, 0), (0, bp - B)))  # zero-padded cols, sliced off
    w1t = w1.T                                     # (H, S)
    b1c = b1.reshape(hidden, 1)                    # (H, 1)
    dw = (w2[:, 1] - w2[:, 0]).reshape(hidden, 1)  # (H, 1)
    db = (b2[1] - b2[0]).reshape(1)                # (1,) SMEM scalar

    flops = bp * (2 * state_dim * hidden + 3 * hidden + 2)
    bytes_accessed = 4 * (state_dim * bp + hidden * state_dim + 2 * hidden + 1
                          + action_dim * bp)

    out_t = pl.pallas_call(
        policy_net_kernel,
        out_shape=jax.ShapeDtypeStruct((action_dim, bp), jnp.float32),
        grid=(n_steps,),
        in_specs=[
            pl.BlockSpec((state_dim, tb), lambda i: (0, i)),        # x^T tile
            pl.BlockSpec((hidden, state_dim), lambda i: (0, 0)),    # w1^T (resident)
            pl.BlockSpec((hidden, 1), lambda i: (0, 0)),            # b1 column (resident)
            pl.BlockSpec((hidden, 1), lambda i: (0, 0)),            # dw column (resident)
            pl.BlockSpec(memory_space=pltpu.MemorySpace.SMEM),      # db scalar
        ],
        out_specs=pl.BlockSpec((action_dim, tb), lambda i: (0, i)),
        compiler_params=pltpu.CompilerParams(
            dimension_semantics=("parallel",)),
        cost_estimate=pl.CostEstimate(
            flops=flops, transcendentals=2 * bp, bytes_accessed=bytes_accessed),
    )(x_t, w1t, b1c, dw, db)

    return out_t[:, :B].T                          # (B, 2)


def init_params(key, state_dim, hidden_dim, action_dim):
    # PyTorch Linear default init: U(-1/sqrt(fan_in), +1/sqrt(fan_in)).
    k1, k2, k3, k4 = jax.random.split(key, 4)
    bound1 = 1.0 / jnp.sqrt(state_dim)
    bound2 = 1.0 / jnp.sqrt(hidden_dim)
    w1 = jax.random.uniform(k1, (state_dim, hidden_dim), jnp.float32, -bound1, bound1)
    b1 = jax.random.uniform(k2, (hidden_dim,), jnp.float32, -bound1, bound1)
    w2 = jax.random.uniform(k3, (hidden_dim, action_dim), jnp.float32, -bound2, bound2)
    b2 = jax.random.uniform(k4, (action_dim,), jnp.float32, -bound2, bound2)
    return w1, b1, w2, b2


if __name__ == "__main__":
    # CartPole-v1: state_dim=4, action_dim=2; hidden_dim=128 (from the module).
    state_dim, hidden_dim, action_dim = 4, 128, 2

    key = jax.random.PRNGKey(0)
    kx, kp, kx2 = jax.random.split(key, 3)
    w1, b1, w2, b2 = init_params(kp, state_dim, hidden_dim, action_dim)

    def reference(x):
        h = jnp.maximum(x @ w1 + b1, 0.0)
        return jax.nn.softmax(h @ w2 + b2, axis=1)

    @jax.jit
    def forward(x):
        return policy_net_forward(x, w1, b1, w2, b2)

    # Batched-rollout case (the regime the kernel is designed for): 2 grid steps.
    x_big = jax.random.normal(kx, (256, state_dim), dtype=jnp.float32)
    out_big = jax.block_until_ready(forward(x_big))
    assert out_big.shape == (256, action_dim)
    assert jnp.allclose(out_big, reference(x_big), atol=1e-5)
    assert jnp.allclose(jnp.sum(out_big, axis=1), 1.0, atol=1e-5)

    # Tiny / ragged batch (single-env steps): exercises the pad + single-tile path.
    x_small = jax.random.normal(kx2, (3, state_dim), dtype=jnp.float32)
    out_small = jax.block_until_ready(forward(x_small))
    assert out_small.shape == (3, action_dim)
    assert jnp.allclose(out_small, reference(x_small), atol=1e-5)
    assert jnp.allclose(jnp.sum(out_small, axis=1), 1.0, atol=1e-5)

    print("KERNEL_OK")
</pallas_src>

<mosaic_0001>
module attributes {stable_mosaic.version = 11 : i64} {
  func.func @policy_net_kernel(%arg0: i32, %arg1: memref<4x128xf32, #tpu.memory_space<vmem>>, %arg2: memref<128x4xf32, #tpu.memory_space<vmem>>, %arg3: memref<128x1xf32, #tpu.memory_space<vmem>>, %arg4: memref<128x1xf32, #tpu.memory_space<vmem>>, %arg5: memref<1xf32, #tpu.memory_space<smem>>, %arg6: memref<2x128xf32, #tpu.memory_space<vmem>>) attributes {dimension_semantics = [#tpu.dimension_semantics<parallel>], iteration_bounds = array<i64: 2>, scalar_prefetch = 0 : i64, scratch_operands = 0 : i64, tpu.core_type = #tpu.core_type<tc>, window_params = [{transform_indices = @transform_0, window_bounds = array<i64: 4, 128>}, {pipeline_mode = #tpu.pipeline_mode<synchronous>, transform_indices = @transform_1, window_bounds = array<i64: 128, 4>}, {pipeline_mode = #tpu.pipeline_mode<synchronous>, transform_indices = @transform_2, window_bounds = array<i64: 128, 1>}, {pipeline_mode = #tpu.pipeline_mode<synchronous>, transform_indices = @transform_3, window_bounds = array<i64: 128, 1>}, {transform_indices = @transform_4, window_bounds = array<i64: 1>}, {transform_indices = @transform_5, window_bounds = array<i64: 2, 128>}]} {
    %c0 = arith.constant 0 : index
    %c0_0 = arith.constant 0 : index
    %0 = vector.load %arg1[%c0, %c0_0] : memref<4x128xf32, #tpu.memory_space<vmem>>, vector<4x128xf32>
    %c0_1 = arith.constant 0 : index
    %c0_2 = arith.constant 0 : index
    %1 = vector.load %arg2[%c0_1, %c0_2] : memref<128x4xf32, #tpu.memory_space<vmem>>, vector<128x4xf32>
    %c0_3 = arith.constant 0 : index
    %c0_4 = arith.constant 0 : index
    %2 = vector.load %arg3[%c0_3, %c0_4] : memref<128x1xf32, #tpu.memory_space<vmem>>, vector<128x1xf32>
    %3 = vector.extract_strided_slice %1 {offsets = [0, 0], sizes = [128, 1], strides = [1, 1]} : vector<128x4xf32> to vector<128x1xf32>
    %4 = vector.extract_strided_slice %0 {offsets = [0, 0], sizes = [1, 128], strides = [1, 1]} : vector<4x128xf32> to vector<1x128xf32>
    %5 = vector.broadcast %3 : vector<128x1xf32> to vector<128x128xf32>
    %6 = vector.broadcast %4 : vector<1x128xf32> to vector<128x128xf32>
    %7 = arith.mulf %5, %6 : vector<128x128xf32>
    %8 = vector.broadcast %2 : vector<128x1xf32> to vector<128x128xf32>
    %9 = arith.addf %8, %7 : vector<128x128xf32>
    %10 = vector.extract_strided_slice %1 {offsets = [0, 1], sizes = [128, 1], strides = [1, 1]} : vector<128x4xf32> to vector<128x1xf32>
    %11 = vector.extract_strided_slice %0 {offsets = [1, 0], sizes = [1, 128], strides = [1, 1]} : vector<4x128xf32> to vector<1x128xf32>
    %12 = vector.broadcast %10 : vector<128x1xf32> to vector<128x128xf32>
    %13 = vector.broadcast %11 : vector<1x128xf32> to vector<128x128xf32>
    %14 = arith.mulf %12, %13 : vector<128x128xf32>
    %15 = arith.addf %9, %14 : vector<128x128xf32>
    %16 = vector.extract_strided_slice %1 {offsets = [0, 2], sizes = [128, 1], strides = [1, 1]} : vector<128x4xf32> to vector<128x1xf32>
    %17 = vector.extract_strided_slice %0 {offsets = [2, 0], sizes = [1, 128], strides = [1, 1]} : vector<4x128xf32> to vector<1x128xf32>
    %18 = vector.broadcast %16 : vector<128x1xf32> to vector<128x128xf32>
    %19 = vector.broadcast %17 : vector<1x128xf32> to vector<128x128xf32>
    %20 = arith.mulf %18, %19 : vector<128x128xf32>
    %21 = arith.addf %15, %20 : vector<128x128xf32>
    %22 = vector.extract_strided_slice %1 {offsets = [0, 3], sizes = [128, 1], strides = [1, 1]} : vector<128x4xf32> to vector<128x1xf32>
    %23 = vector.extract_strided_slice %0 {offsets = [3, 0], sizes = [1, 128], strides = [1, 1]} : vector<4x128xf32> to vector<1x128xf32>
    %24 = vector.broadcast %22 : vector<128x1xf32> to vector<128x128xf32>
    %25 = vector.broadcast %23 : vector<1x128xf32> to vector<128x128xf32>
    %26 = arith.mulf %24, %25 : vector<128x128xf32>
    %27 = arith.addf %21, %26 : vector<128x128xf32>
    %cst = arith.constant 0.000000e+00 : f32
    %28 = vector.broadcast %cst : f32 to vector<128x128xf32>
    %29 = arith.maximumf %27, %28 : vector<128x128xf32>
    %c0_5 = arith.constant 0 : index
    %c0_6 = arith.constant 0 : index
    %30 = vector.load %arg4[%c0_5, %c0_6] : memref<128x1xf32, #tpu.memory_space<vmem>>, vector<128x1xf32>
    %31 = vector.broadcast %30 : vector<128x1xf32> to vector<128x128xf32>
    %32 = arith.mulf %29, %31 : vector<128x128xf32>
    %cst_7 = arith.constant dense<0.000000e+00> : vector<128xf32>
    %33 = vector.multi_reduction <add>, %32, %cst_7 [0] : vector<128x128xf32> to vector<128xf32>
    %34 = vector.shape_cast %33 : vector<128xf32> to vector<1x128xf32>
    %c0_8 = arith.constant 0 : index
    %35 = memref.load %arg5[%c0_8] : memref<1xf32, #tpu.memory_space<smem>>
    %36 = vector.broadcast %35 : f32 to vector<1x128xf32>
    %37 = arith.addf %34, %36 : vector<1x128xf32>
    %38 = arith.negf %37 : vector<1x128xf32>
    %39 = math.exp %38 : vector<1x128xf32>
    %cst_9 = arith.constant 1.000000e+00 : f32
    %40 = vector.broadcast %cst_9 : f32 to vector<1x128xf32>
    %41 = arith.addf %40, %39 : vector<1x128xf32>
    %42 = arith.divf %40, %41 : vector<1x128xf32>
    %cst_10 = arith.constant 0.000000e+00 : f32
    %43 = vector.broadcast %cst_10 : f32 to vector<1x128xf32>
    %44 = arith.subf %43, %37 : vector<1x128xf32>
    %45 = arith.negf %44 : vector<1x128xf32>
    %46 = math.exp %45 : vector<1x128xf32>
    %cst_11 = arith.constant 1.000000e+00 : f32
    %47 = vector.broadcast %cst_11 : f32 to vector<1x128xf32>
    %48 = arith.addf %47, %46 : vector<1x128xf32>
    %49 = arith.divf %47, %48 : vector<1x128xf32>
    %c0_12 = arith.constant 0 : index
    %c0_13 = arith.constant 0 : index
    %50 = vector.load %arg6[%c0_12, %c0_13] : memref<2x128xf32, #tpu.memory_space<vmem>>, vector<1x128xf32>
    tpu.vector_store %arg6[%c0_12, %c0_13], %49 {strides = array<i32>} : memref<2x128xf32, #tpu.memory_space<vmem>>, vector<1x128xf32>,
    %c1 = arith.constant 1 : index
    %c0_14 = arith.constant 0 : index
    %51 = vector.load %arg6[%c1, %c0_14] : memref<2x128xf32, #tpu.memory_space<vmem>>, vector<1x128xf32>
    tpu.vector_store %arg6[%c1, %c0_14], %42 {strides = array<i32>} : memref<2x128xf32, #tpu.memory_space<vmem>>, vector<1x128xf32>,
    return
  }
  func.func @transform_0(%arg0: i32) -> (i32, i32) {
    %c0_i32 = arith.constant 0 : i32
    %c0_i32_0 = arith.constant 0 : i32
    return %c0_i32, %arg0 : i32, i32
  }
  func.func @transform_1(%arg0: i32) -> (i32, i32) {
    %c0_i32 = arith.constant 0 : i32
    %c0_i32_0 = arith.constant 0 : i32
    %c0_i32_1 = arith.constant 0 : i32
    return %c0_i32, %c0_i32_0 : i32, i32
  }
  func.func @transform_2(%arg0: i32) -> (i32, i32) {
    %c0_i32 = arith.constant 0 : i32
    %c0_i32_0 = arith.constant 0 : i32
    %c0_i32_1 = arith.constant 0 : i32
    return %c0_i32, %c0_i32_0 : i32, i32
  }
  func.func @transform_3(%arg0: i32) -> (i32, i32) {
    %c0_i32 = arith.constant 0 : i32
    %c0_i32_0 = arith.constant 0 : i32
    %c0_i32_1 = arith.constant 0 : i32
    return %c0_i32, %c0_i32_0 : i32, i32
  }
  func.func @transform_4(%arg0: i32) -> i32 {
    %c0_i32 = arith.constant 0 : i32
    %c0_i32_0 = arith.constant 0 : i32
    return %c0_i32 : i32
  }
  func.func @transform_5(%arg0: i32) -> (i32, i32) {
    %c0_i32 = arith.constant 0 : i32
    %c0_i32_0 = arith.constant 0 : i32
    return %c0_i32, %arg0 : i32, i32
  }
}

</mosaic_0001>

<llo_original>
// kernel: forward.1
$region0: #{forward.1}
  #allocation0 [shape = 'u32[]', space=smem, size = 0x4, offset = 0x4, fixed_abs, tag = 'smem constant byte address 0x4 - core index']
  #allocation1 [shape = 'u32[144,128]{1,0:T(1,128)}', space=vmem, size = 0x12000, scoped, tag = 'internal scratch']
  #allocation2 [shape = 'f32[1]{0:T(128)S(6)}', space=smem, size = 0x200, scoped, tag = 'scoped memory for forward.1']
  %s0 = inlined_call_operand.hbm [shape: f32[4,256], index: 0, kind: input, shape index: {}]
  %s1 = inlined_call_operand.hbm [shape: f32[128,4], index: 1, kind: input, shape index: {}]
  %s2 = inlined_call_operand.hbm [shape: f32[128,1], index: 2, kind: input, shape index: {}]
  %s3 = inlined_call_operand.hbm [shape: f32[128,1], index: 3, kind: input, shape index: {}]
  %s4 = inlined_call_operand.<no memory space> [shape: f32[1], index: 4, kind: input, shape index: {}]
  %s5 = inlined_call_operand.hbm [shape: f32[2,256], index: 5, kind: output, shape index: {}]
  %s6 = sld [smem:[#allocation0]]
  $region69: #{forward.1} parent=0
    _
  %s8 = ssub.s32 1, %s6
  %s9 = scalar_select 0, %s8, %s6
  %10 = sst [smem:[#allocation2]] %s4
  $region1: #{forward.1} parent=0
    #allocation3 [shape = 'u8[4096]{0}', space=vmem, size = 0x1000, scoped, tag = 'input window, operand 0']
    #allocation4 [shape = 's32[2]{0}', space=sflag, size = 0x8, scoped, tag = 'scoped memory for forward.1']
    #allocation5 [shape = 's32[2]{0}', space=sflag, size = 0x8, scoped, tag = 'scoped memory for forward.1']
    #allocation6 [shape = 'u8[65536]{0}', space=vmem, size = 0x10000, scoped, tag = 'input window, operand 1, single buffered']
    #allocation7 [shape = 's32[1]{0}', space=sflag, size = 0x4, scoped, tag = 'scoped memory for forward.1']
    #allocation8 [shape = 'u8[65536]{0}', space=vmem, size = 0x10000, scoped, tag = 'input window, operand 2, single buffered']
    #allocation9 [shape = 'u8[65536]{0}', space=vmem, size = 0x10000, scoped, tag = 'input window, operand 3, single buffered']
    #allocation10 [shape = 's32[1]{0}', space=sflag, size = 0x4, scoped, tag = 'scoped memory for forward.1']
    #allocation11 [shape = 'u8[2048]{0}', space=vmem, size = 0x800, scoped, tag = 'output window, operand 0']
    %11 = vsyncpa [#allocation4], 0
    %s12 = scalar_lea.sflag [#allocation4], 1
    %13 = vsyncpa %s12, 0
    %14 = vsyncpa [#allocation7], 0
    %15 = vsyncpa [#allocation10], 0
    %16 = vsyncpa [#allocation5], 0
    %s17 = scalar_lea.sflag [#allocation5], 1
    %18 = vsyncpa %s17, 0
    loop: start=0, step=1, limit=4
    $region2: #{forward.1} parent=1 // loop_pre_header
      _
    $region3: #{forward.1} parent=1 // loop_header
      %s20 = sphi 0, %s24
      %p21 = scmp.ge.s32.totalorder %s20, 4
      %s30 = sphi 0, %s32
      %s33 = sphi 0, %s30
      %s34 = sphi 0, %s33
      %s50 = sphi 0, %s34
      %s54 = sphi 0, %s54
      %s56 = sphi 0, %s54
      %s57 = sphi 0, %s56
      %s71 = sphi 0, %s57
      %s75 = sphi 0, %s75
      %s77 = sphi 0, %s75
      %s78 = sphi 0, %s77
      %s92 = sphi 0, %s78
      %s96 = sphi 0, %s96
      %s98 = sphi 0, %s96
      %s99 = sphi 0, %s98
      %s113 = sphi 0, %s99
      %s117 = sphi 0, %s117
      %s119 = sphi 0, %s117
      %s120 = sphi 0, %s119
      %s134 = sphi 0, %s120
      %s140 = sphi 0, %s142
      %s143 = sphi 0, %s140
      %s144 = sphi 0, %s143
      %s160 = sphi 0, %s144
    $region4: #{forward.1} parent=1 // loop_header_branch
      %23 = sbr.rel (%p21) target = $region8
    $region5: #{forward.1} parent=1 // loop_body
      %s25 = ssub.s32 %s20, 1
      %s26 = ssub.s32 %s20, 2
      %s27 = sadd.s32 %s20, 1
      %s28 = ssub.s32 %s20, %s27
      %p29 = scmp.eq.s32.totalorder %s28, 0
      %s31 = sadd.s32 %s30, 1
      %s32 = scalar_select %p29, %s30, %s31
      %p35 = pneg %p29
      %p36 = scmp.eq.s32.totalorder %s20, 1
      %p37 = por %p35, %p36
      %p38 = scmp.ne.s32.totalorder %s30, %s33
      %p39 = scmp.eq.s32.totalorder %s20, 0
      %p40 = por %p38, %p39
      %p41 = scmp.ne.s32.totalorder %s30, %s33
      %p42 = scmp.eq.s32.totalorder %s25, 1
      %p43 = por %p41, %p42
      %p44 = scmp.ne.s32.totalorder %s33, %s34
      %p45 = scmp.eq.s32.totalorder %s25, 0
      %p46 = por %p44, %p45
      %p47 = scmp.ne.s32.totalorder %s33, %s34
      %p48 = scmp.eq.s32.totalorder %s26, 1
      %p49 = por %p47, %p48
      %p51 = scmp.ne.s32.totalorder %s34, %s50
      %p52 = scmp.eq.s32.totalorder %s26, 0
      %p53 = por %p51, %p52
      %s55 = sadd.s32 %s54, 1
      %p58 = scmp.eq.s32.totalorder %s20, 1
      %p59 = scmp.ne.s32.totalorder %s54, %s56
      %p60 = scmp.eq.s32.totalorder %s20, 0
      %p61 = por %p59, %p60
      %p62 = scmp.ne.s32.totalorder %s54, %s56
      %p63 = scmp.eq.s32.totalorder %s25, 1
      %p64 = por %p62, %p63
      %p65 = scmp.ne.s32.totalorder %s56, %s57
      %p66 = scmp.eq.s32.totalorder %s25, 0
      %p67 = por %p65, %p66
      %p68 = scmp.ne.s32.totalorder %s56, %s57
      %p69 = scmp.eq.s32.totalorder %s26, 1
      %p70 = por %p68, %p69
      %p72 = scmp.ne.s32.totalorder %s57, %s71
      %p73 = scmp.eq.s32.totalorder %s26, 0
      %p74 = por %p72, %p73
      %s76 = sadd.s32 %s75, 1
      %p79 = scmp.eq.s32.totalorder %s20, 1
      %p80 = scmp.ne.s32.totalorder %s75, %s77
      %p81 = scmp.eq.s32.totalorder %s20, 0
      %p82 = por %p80, %p81
      %p83 = scmp.ne.s32.totalorder %s75, %s77
      %p84 = scmp.eq.s32.totalorder %s25, 1
      %p85 = por %p83, %p84
      %p86 = scmp.ne.s32.totalorder %s77, %s78
      %p87 = scmp.eq.s32.totalorder %s25, 0
      %p88 = por %p86, %p87
      %p89 = scmp.ne.s32.totalorder %s77, %s78
      %p90 = scmp.eq.s32.totalorder %s26, 1
      %p91 = por %p89, %p90
      %p93 = scmp.ne.s32.totalorder %s78, %s92
      %p94 = scmp.eq.s32.totalorder %s26, 0
      %p95 = por %p93, %p94
      %s97 = sadd.s32 %s96, 1
      %p100 = scmp.eq.s32.totalorder %s20, 1
      %p101 = scmp.ne.s32.totalorder %s96, %s98
      %p102 = scmp.eq.s32.totalorder %s20, 0
      %p103 = por %p101, %p102
      %p104 = scmp.ne.s32.totalorder %s96, %s98
      %p105 = scmp.eq.s32.totalorder %s25, 1
      %p106 = por %p104, %p105
      %p107 = scmp.ne.s32.totalorder %s98, %s99
      %p108 = scmp.eq.s32.totalorder %s25, 0
      %p109 = por %p107, %p108
      %p110 = scmp.ne.s32.totalorder %s98, %s99
      %p111 = scmp.eq.s32.totalorder %s26, 1
      %p112 = por %p110, %p111
      %p114 = scmp.ne.s32.totalorder %s99, %s113
      %p115 = scmp.eq.s32.totalorder %s26, 0
      %p116 = por %p114, %p115
      %s118 = sadd.s32 %s117, 1
      %p121 = scmp.eq.s32.totalorder %s20, 1
      %p122 = scmp.ne.s32.totalorder %s117, %s119
      %p123 = scmp.eq.s32.totalorder %s20, 0
      %p124 = por %p122, %p123
      %p125 = scmp.ne.s32.totalorder %s117, %s119
      %p126 = scmp.eq.s32.totalorder %s25, 1
      %p127 = por %p125, %p126
      %p128 = scmp.ne.s32.totalorder %s119, %s120
      %p129 = scmp.eq.s32.totalorder %s25, 0
      %p130 = por %p128, %p129
      %p131 = scmp.ne.s32.totalorder %s119, %s120
      %p132 = scmp.eq.s32.totalorder %s26, 1
      %p133 = por %p131, %p132
      %p135 = scmp.ne.s32.totalorder %s120, %s134
      %p136 = scmp.eq.s32.totalorder %s26, 0
      %p137 = por %p135, %p136
      %s138 = ssub.s32 %s20, %s27
      %p139 = scmp.eq.s32.totalorder %s138, 0
      %s141 = sadd.s32 %s140, 1
      %s142 = scalar_select %p139, %s140, %s141
      %p145 = pneg %p139
      %p146 = scmp.eq.s32.totalorder %s20, 1
      %p147 = por %p145, %p146
      %p148 = scmp.ne.s32.totalorder %s140, %s143
      %p149 = scmp.eq.s32.totalorder %s20, 0
      %p150 = por %p148, %p149
      %p151 = scmp.ne.s32.totalorder %s140, %s143
      %p152 = scmp.eq.s32.totalorder %s25, 1
      %p153 = por %p151, %p152
      %p154 = scmp.ne.s32.totalorder %s143, %s144
      %p155 = scmp.eq.s32.totalorder %s25, 0
      %p156 = por %p154, %p155
      %p157 = scmp.ne.s32.totalorder %s143, %s144
      %p158 = scmp.eq.s32.totalorder %s26, 1
      %p159 = por %p157, %p158
      %p161 = scmp.ne.s32.totalorder %s144, %s160
      %p162 = scmp.eq.s32.totalorder %s26, 0
      %p163 = por %p161, %p162
      %p164 = scmp.le.s32.totalorder 1, %s20
      %p165 = scmp.lt.s32.totalorder %s20, 3
      %p166 = pnand %p164, %p165
      %p167 = pneg %p166
      // Predicated region
      $region9: #{forward.1} parent=5 // pred_check
        _
      $region10: #{forward.1} parent=5 // pred_check_branch
        %169 = sbr.rel (%p166) target = $region12
      $region11: #{forward.1} parent=5 // pred_region
        %s170 = ssub.s32 %s20, 1
        // Predicated region
        $region13: #{forward.1} parent=11 // pred_check
          %p171 = pneg %p67
        $region14: #{forward.1} parent=11 // pred_check_branch
          %173 = sbr.rel (%p171) target = $region16
        $region15: #{forward.1} parent=11 // pred_region
          %s175 = ssub.s32 2048, 2048
          %176 = vsyncadd [#allocation7], %s175
          %s177 = sshll.u32 [#allocation6], 4
          %s178 = int_to_ptr.vmem [resolvable:$true] %s177
          %183 = dma.hbm_to_vmem [thread:$0]  %s1, 2048, %s178, [#allocation7], 128, 128, 8
        $region16: #{forward.1} parent=11 // pred_fallthru
          _
        // Predicated region
        $region17: #{forward.1} parent=11 // pred_check
          %p184 = pneg %p88
        $region18: #{forward.1} parent=11 // pred_check_branch
          %186 = sbr.rel (%p184) target = $region20
        $region19: #{forward.1} parent=11 // pred_region
          %s188 = ssub.s32 2048, 2048
          %189 = vsyncadd [#allocation7], %s188
          %s190 = sshll.u32 [#allocation8], 4
          %s191 = int_to_ptr.vmem [resolvable:$true] %s190
          %196 = dma.hbm_to_vmem [thread:$0]  %s2, 2048, %s191, [#allocation7], 128, 128, 8
        $region20: #{forward.1} parent=11 // pred_fallthru
          _
        // Predicated region
        $region21: #{forward.1} parent=11 // pred_check
          %p197 = pneg %p109
        $region22: #{forward.1} parent=11 // pred_check_branch
          %199 = sbr.rel (%p197) target = $region24
        $region23: #{forward.1} parent=11 // pred_region
          %s201 = ssub.s32 2048, 2048
          %202 = vsyncadd [#allocation10], %s201
          %s203 = sshll.u32 [#allocation9], 4
          %s204 = int_to_ptr.vmem [resolvable:$true] %s203
          %209 = dma.hbm_to_vmem [thread:$0]  %s3, 2048, %s204, [#allocation10], 128, 128, 8
        $region24: #{forward.1} parent=11 // pred_fallthru
          _
        // Predicated region
        $region25: #{forward.1} parent=11 // pred_check
          %p210 = pneg %p130
        $region26: #{forward.1} parent=11 // pred_check_branch
          %212 = sbr.rel (%p210) target = $region28
        $region27: #{forward.1} parent=11 // pred_region
          _
        $region28: #{forward.1} parent=11 // pred_fallthru
          _
      $region12: #{forward.1} parent=5 // pred_fallthru
        _
      %p213 = scmp.lt.s32.totalorder %s20, 2
      // Predicated region
      $region29: #{forward.1} parent=5 // pred_check
        %p214 = pneg %p213
      $region30: #{forward.1} parent=5 // pred_check_branch
        %216 = sbr.rel (%p214) target = $region32
      $region31: #{forward.1} parent=5 // pred_region
        // Predicated region
        $region33: #{forward.1} parent=31 // pred_check
          %p217 = pneg %p40
        $region34: #{forward.1} parent=31 // pred_check_branch
          %219 = sbr.rel (%p217) target = $region36
        $region35: #{forward.1} parent=31 // pred_region
          %s220 = sand.u32 %s30, 1
          %s221 = scalar_lea.sflag [#allocation4], %s220
          %s222 = sand.u32 %s30, 1
          %s223 = smul.addr %s222, 4
          %s224 = scalar_lea.vmem [#allocation3], %s223
          %s226 = ssub.s32 64, 64
          %227 = vsyncadd %s221, %s226
          %s228 = smul.addr %s20, 64
          %s229 = scalar_lea.hbm %s0, %s228
          %s231 = sshll.u32 %s224, 4
          %s232 = int_to_ptr.vmem [resolvable:$true] %s231
          %234 = dma.hbm_to_vmem [thread:$0]  %s229, 64, %s232, %s221
        $region36: #{forward.1} parent=31 // pred_fallthru
          _
      $region32: #{forward.1} parent=5 // pred_fallthru
        _
      %p235 = scmp.le.s32.totalorder 1, %s20
      %p236 = scmp.lt.s32.totalorder %s20, 3
      %p237 = pnand %p235, %p236
      %p238 = pneg %p237
      // Predicated region
      $region37: #{forward.1} parent=5 // pred_check
        _
      $region38: #{forward.1} parent=5 // pred_check_branch
        %240 = sbr.rel (%p237) target = $region40
      $region39: #{forward.1} parent=5 // pred_region
        %s241 = ssub.s32 %s20, 1
        %s242 = sand.u32 %s33, 1
        %s243 = scalar_lea.sflag [#allocation4], %s242
        %s244 = sand.u32 %s33, 1
        %s245 = smul.addr %s244, 4
        %s246 = scalar_lea.vmem [#allocation3], %s245
        // Predicated region
        $region41: #{forward.1} parent=39 // pred_check
          %p247 = pneg %p46
        $region42: #{forward.1} parent=39 // pred_check_branch
          %249 = sbr.rel (%p247) target = $region44
        $region43: #{forward.1} parent=39 // pred_region
          %250 = dma.done %s243, 64
        $region44: #{forward.1} parent=39 // pred_fallthru
          _
        // Predicated region
        $region45: #{forward.1} parent=39 // pred_check
          %p251 = pneg %p67
        $region46: #{forward.1} parent=39 // pred_check_branch
          %253 = sbr.rel (%p251) target = $region48
        $region47: #{forward.1} parent=39 // pred_region
          %254 = dma.done [#allocation7], 2048
        $region48: #{forward.1} parent=39 // pred_fallthru
          _
        // Predicated region
        $region49: #{forward.1} parent=39 // pred_check
          %p255 = pneg %p88
        $region50: #{forward.1} parent=39 // pred_check_branch
          %257 = sbr.rel (%p255) target = $region52
        $region51: #{forward.1} parent=39 // pred_region
          %258 = dma.done [#allocation7], 2048
        $region52: #{forward.1} parent=39 // pred_fallthru
          _
        // Predicated region
        $region53: #{forward.1} parent=39 // pred_check
          %p259 = pneg %p109
        $region54: #{forward.1} parent=39 // pred_check_branch
          %261 = sbr.rel (%p259) target = $region56
        $region55: #{forward.1} parent=39 // pred_region
          %262 = dma.done [#allocation10], 2048
        $region56: #{forward.1} parent=39 // pred_fallthru
          _
        %s263 = sand.u32 %s33, 1
        %s264 = scalar_lea.sflag [#allocation4], %s263
        %s265 = sand.u32 %s33, 1
        %s266 = smul.addr %s265, 4
        %s267 = scalar_lea.vmem [#allocation3], %s266
        %p268 = pneg %p46
        %p269 = pneg %p43
        %p270 = pneg %p67
        %p271 = pneg %p64
        %p272 = pneg %p88
        %p273 = pneg %p85
        %p274 = pneg %p109
        %p275 = pneg %p106
        %p276 = pneg %p130
        %p277 = pneg %p127
        %p278 = pneg %p156
        %p279 = pneg %p153
        %s280 = sand.u32 %s143, 1
        %s281 = scalar_lea.sflag [#allocation5], %s280
        %s282 = sand.u32 %s143, 1
        %s283 = smul.addr %s282, 2
        %s284 = scalar_lea.vmem [#allocation11], %s283
        %v285 = vld [vmem:[%s246] sm:$0xf]
        %v286 = vld [vmem:[#allocation6] sm:$0xff]
        %v287 = vld [vmem:[#allocation6 + $0x8] sm:$0xff]
        %v288 = vld [vmem:[#allocation6 + $0x10] sm:$0xff]
        %v289 = vld [vmem:[#allocation6 + $0x18] sm:$0xff]
        %v290 = vld [vmem:[#allocation6 + $0x20] sm:$0xff]
        %v291 = vld [vmem:[#allocation6 + $0x28] sm:$0xff]
        %v292 = vld [vmem:[#allocation6 + $0x30] sm:$0xff]
        %v293 = vld [vmem:[#allocation6 + $0x38] sm:$0xff]
        %v294 = vld [vmem:[#allocation6 + $0x40] sm:$0xff]
        %v295 = vld [vmem:[#allocation6 + $0x48] sm:$0xff]
        %v296 = vld [vmem:[#allocation6 + $0x50] sm:$0xff]
        %v297 = vld [vmem:[#allocation6 + $0x58] sm:$0xff]
        %v298 = vld [vmem:[#allocation6 + $0x60] sm:$0xff]
        %v299 = vld [vmem:[#allocation6 + $0x68] sm:$0xff]
        %v300 = vld [vmem:[#allocation6 + $0x70] sm:$0xff]
        %v301 = vld [vmem:[#allocation6 + $0x78] sm:$0xff]
        %v302 = vld [vmem:[#allocation8] sm:$0xff]
        %v303 = vld [vmem:[#allocation8 + $0x8] sm:$0xff]
        %v304 = vld [vmem:[#allocation8 + $0x10] sm:$0xff]
        %v305 = vld [vmem:[#allocation8 + $0x18] sm:$0xff]
        %v306 = vld [vmem:[#allocation8 + $0x20] sm:$0xff]
        %v307 = vld [vmem:[#allocation8 + $0x28] sm:$0xff]
        %v308 = vld [vmem:[#allocation8 + $0x30] sm:$0xff]
        %v309 = vld [vmem:[#allocation8 + $0x38] sm:$0xff]
        %v310 = vld [vmem:[#allocation8 + $0x40] sm:$0xff]
        %v311 = vld [vmem:[#allocation8 + $0x48] sm:$0xff]
        %v312 = vld [vmem:[#allocation8 + $0x50] sm:$0xff]
        %v313 = vld [vmem:[#allocation8 + $0x58] sm:$0xff]
        %v314 = vld [vmem:[#allocation8 + $0x60] sm:$0xff]
        %v315 = vld [vmem:[#allocation8 + $0x68] sm:$0xff]
        %v316 = vld [vmem:[#allocation8 + $0x70] sm:$0xff]
        %v317 = vld [vmem:[#allocation8 + $0x78] sm:$0xff]
        %319 = vset.pattern.permute.xlu0 0
        %320 = vperm.xlu0 %319, %v286
        %v321 = vpop.permute.xlu0 %320
        %324 = vset.pattern.permute.xlu0 0
        %325 = vperm.xlu0 %324, %v287
        %v326 = vpop.permute.xlu0 %325
        %329 = vset.pattern.permute.xlu0 0
        %330 = vperm.xlu0 %329, %v288
        %v331 = vpop.permute.xlu0 %330
        %334 = vset.pattern.permute.xlu0 0
        %335 = vperm.xlu0 %334, %v289
        %v336 = vpop.permute.xlu0 %335
        %339 = vset.pattern.permute.xlu0 0
        %340 = vperm.xlu0 %339, %v290
        %v341 = vpop.permute.xlu0 %340
        %344 = vset.pattern.permute.xlu0 0
        %345 = vperm.xlu0 %344, %v291
        %v346 = vpop.permute.xlu0 %345
        %349 = vset.pattern.permute.xlu0 0
        %350 = vperm.xlu0 %349, %v292
        %v351 = vpop.permute.xlu0 %350
        %354 = vset.pattern.permute.xlu0 0
        %355 = vperm.xlu0 %354, %v293
        %v356 = vpop.permute.xlu0 %355
        %359 = vset.pattern.permute.xlu0 0
        %360 = vperm.xlu0 %359, %v294
        %v361 = vpop.permute.xlu0 %360
        %364 = vset.pattern.permute.xlu0 0
        %365 = vperm.xlu0 %364, %v295
        %v366 = vpop.permute.xlu0 %365
        %369 = vset.pattern.permute.xlu0 0
        %370 = vperm.xlu0 %369, %v296
        %v371 = vpop.permute.xlu0 %370
        %374 = vset.pattern.permute.xlu0 0
        %375 = vperm.xlu0 %374, %v297
        %v376 = vpop.permute.xlu0 %375
        %379 = vset.pattern.permute.xlu0 0
        %380 = vperm.xlu0 %379, %v298
        %v381 = vpop.permute.xlu0 %380
        %384 = vset.pattern.permute.xlu0 0
        %385 = vperm.xlu0 %384, %v299
        %v386 = vpop.permute.xlu0 %385
        %389 = vset.pattern.permute.xlu0 0
        %390 = vperm.xlu0 %389, %v300
        %v391 = vpop.permute.xlu0 %390
        %394 = vset.pattern.permute.xlu0 0
        %395 = vperm.xlu0 %394, %v301
        %v396 = vpop.permute.xlu0 %395
        %v398 = vlaneseq
        %v399 = vshrl.u32 %v398, 7
        %v400 = vsub.s32 0, %v399
        %v401 = vrot.slane %v285, %v400
        %v402 = vmul.f32 %v321, %v401
        %v403 = vmul.f32 %v326, %v401
        %v404 = vmul.f32 %v331, %v401
        %v405 = vmul.f32 %v336, %v401
        %v406 = vmul.f32 %v341, %v401
        %v407 = vmul.f32 %v346, %v401
        %v408 = vmul.f32 %v351, %v401
        %v409 = vmul.f32 %v356, %v401
        %v410 = vmul.f32 %v361, %v401
        %v411 = vmul.f32 %v366, %v401
        %v412 = vmul.f32 %v371, %v401
        %v413 = vmul.f32 %v376, %v401
        %v414 = vmul.f32 %v381, %v401
        %v415 = vmul.f32 %v386, %v401
        %v416 = vmul.f32 %v391, %v401
        %v417 = vmul.f32 %v396, %v401
        %419 = vset.pattern.permute.xlu0 0
        %420 = vperm.xlu0 %419, %v302
        %v421 = vpop.permute.xlu0 %420
        %424 = vset.pattern.permute.xlu0 0
        %425 = vperm.xlu0 %424, %v303
        %v426 = vpop.permute.xlu0 %425
        %429 = vset.pattern.permute.xlu0 0
        %430 = vperm.xlu0 %429, %v304
        %v431 = vpop.permute.xlu0 %430
        %434 = vset.pattern.permute.xlu0 0
        %435 = vperm.xlu0 %434, %v305
        %v436 = vpop.permute.xlu0 %435
        %439 = vset.pattern.permute.xlu0 0
        %440 = vperm.xlu0 %439, %v306
        %v441 = vpop.permute.xlu0 %440
        %444 = vset.pattern.permute.xlu0 0
        %445 = vperm.xlu0 %444, %v307
        %v446 = vpop.permute.xlu0 %445
        %449 = vset.pattern.permute.xlu0 0
        %450 = vperm.xlu0 %449, %v308
        %v451 = vpop.permute.xlu0 %450
        %454 = vset.pattern.permute.xlu0 0
        %455 = vperm.xlu0 %454, %v309
        %v456 = vpop.permute.xlu0 %455
        %459 = vset.pattern.permute.xlu0 0
        %460 = vperm.xlu0 %459, %v310
        %v461 = vpop.permute.xlu0 %460
        %464 = vset.pattern.permute.xlu0 0
        %465 = vperm.xlu0 %464, %v311
        %v466 = vpop.permute.xlu0 %465
        %469 = vset.pattern.permute.xlu0 0
        %470 = vperm.xlu0 %469, %v312
        %v471 = vpop.permute.xlu0 %470
        %474 = vset.pattern.permute.xlu0 0
        %475 = vperm.xlu0 %474, %v313
        %v476 = vpop.permute.xlu0 %475
        %479 = vset.pattern.permute.xlu0 0
        %480 = vperm.xlu0 %479, %v314
        %v481 = vpop.permute.xlu0 %480
        %484 = vset.pattern.permute.xlu0 0
        %485 = vperm.xlu0 %484, %v315
        %v486 = vpop.permute.xlu0 %485
        %489 = vset.pattern.permute.xlu0 0
        %490 = vperm.xlu0 %489, %v316
        %v491 = vpop.permute.xlu0 %490
        %494 = vset.pattern.permute.xlu0 0
        %495 = vperm.xlu0 %494, %v317
        %v496 = vpop.permute.xlu0 %495
        %v498 = vadd.f32 %v421, %v402
        %v499 = vadd.f32 %v426, %v403
        %v500 = vadd.f32 %v431, %v404
        %v501 = vadd.f32 %v436, %v405
        %v502 = vadd.f32 %v441, %v406
        %v503 = vadd.f32 %v446, %v407
        %v504 = vadd.f32 %v451, %v408
        %v505 = vadd.f32 %v456, %v409
        %v506 = vadd.f32 %v461, %v410
        %v507 = vadd.f32 %v466, %v411
        %v508 = vadd.f32 %v471, %v412
        %v509 = vadd.f32 %v476, %v413
        %v510 = vadd.f32 %v481, %v414
        %v511 = vadd.f32 %v486, %v415
        %v512 = vadd.f32 %v491, %v416
        %v513 = vadd.f32 %v496, %v417
        %514 = vset.pattern.permute.xlu0 1
        %515 = vperm.xlu0 %514, %v286
        %v516 = vpop.permute.xlu0 %515
        %518 = vset.pattern.permute.xlu0 1
        %519 = vperm.xlu0 %518, %v287
        %v520 = vpop.permute.xlu0 %519
        %522 = vset.pattern.permute.xlu0 1
        %523 = vperm.xlu0 %522, %v288
        %v524 = vpop.permute.xlu0 %523
        %526 = vset.pattern.permute.xlu0 1
        %527 = vperm.xlu0 %526, %v289
        %v528 = vpop.permute.xlu0 %527
        %530 = vset.pattern.permute.xlu0 1
        %531 = vperm.xlu0 %530, %v290
        %v532 = vpop.permute.xlu0 %531
        %534 = vset.pattern.permute.xlu0 1
        %535 = vperm.xlu0 %534, %v291
        %v536 = vpop.permute.xlu0 %535
        %538 = vset.pattern.permute.xlu0 1
        %539 = vperm.xlu0 %538, %v292
        %v540 = vpop.permute.xlu0 %539
        %542 = vset.pattern.permute.xlu0 1
        %543 = vperm.xlu0 %542, %v293
        %v544 = vpop.permute.xlu0 %543
        %546 = vset.pattern.permute.xlu0 1
        %547 = vperm.xlu0 %546, %v294
        %v548 = vpop.permute.xlu0 %547
        %550 = vset.pattern.permute.xlu0 1
        %551 = vperm.xlu0 %550, %v295
        %v552 = vpop.permute.xlu0 %551
        %554 = vset.pattern.permute.xlu0 1
        %555 = vperm.xlu0 %554, %v296
        %v556 = vpop.permute.xlu0 %555
        %558 = vset.pattern.permute.xlu0 1
        %559 = vperm.xlu0 %558, %v297
        %v560 = vpop.permute.xlu0 %559
        %562 = vset.pattern.permute.xlu0 1
        %563 = vperm.xlu0 %562, %v298
        %v564 = vpop.permute.xlu0 %563
        %566 = vset.pattern.permute.xlu0 1
        %567 = vperm.xlu0 %566, %v299
        %v568 = vpop.permute.xlu0 %567
        %570 = vset.pattern.permute.xlu0 1
        %571 = vperm.xlu0 %570, %v300
        %v572 = vpop.permute.xlu0 %571
        %574 = vset.pattern.permute.xlu0 1
        %575 = vperm.xlu0 %574, %v301
        %v576 = vpop.permute.xlu0 %575
        %v578 = vlaneseq
        %v579 = vshrl.u32 %v578, 7
        %v580 = vsub.s32 1, %v579
        %v581 = vrot.slane %v285, %v580
        %v582 = vmul.f32 %v516, %v581
        %v583 = vmul.f32 %v520, %v581
        %v584 = vmul.f32 %v524, %v581
        %v585 = vmul.f32 %v528, %v581
        %v586 = vmul.f32 %v532, %v581
        %v587 = vmul.f32 %v536, %v581
        %v588 = vmul.f32 %v540, %v581
        %v589 = vmul.f32 %v544, %v581
        %v590 = vmul.f32 %v548, %v581
        %v591 = vmul.f32 %v552, %v581
        %v592 = vmul.f32 %v556, %v581
        %v593 = vmul.f32 %v560, %v581
        %v594 = vmul.f32 %v564, %v581
        %v595 = vmul.f32 %v568, %v581
        %v596 = vmul.f32 %v572, %v581
        %v597 = vmul.f32 %v576, %v581
        %v598 = vadd.f32 %v498, %v582
        %v599 = vadd.f32 %v499, %v583
        %v600 = vadd.f32 %v500, %v584
        %v601 = vadd.f32 %v501, %v585
        %v602 = vadd.f32 %v502, %v586
        %v603 = vadd.f32 %v503, %v587
        %v604 = vadd.f32 %v504, %v588
        %v605 = vadd.f32 %v505, %v589
        %v606 = vadd.f32 %v506, %v590
        %v607 = vadd.f32 %v507, %v591
        %v608 = vadd.f32 %v508, %v592
        %v609 = vadd.f32 %v509, %v593
        %v610 = vadd.f32 %v510, %v594
        %v611 = vadd.f32 %v511, %v595
        %v612 = vadd.f32 %v512, %v596
        %v613 = vadd.f32 %v513, %v597
        %614 = vset.pattern.permute.xlu0 2
        %615 = vperm.xlu0 %614, %v286
        %v616 = vpop.permute.xlu0 %615
        %618 = vset.pattern.permute.xlu0 2
        %619 = vperm.xlu0 %618, %v287
        %v620 = vpop.permute.xlu0 %619
        %622 = vset.pattern.permute.xlu0 2
        %623 = vperm.xlu0 %622, %v288
        %v624 = vpop.permute.xlu0 %623
        %626 = vset.pattern.permute.xlu0 2
        %627 = vperm.xlu0 %626, %v289
        %v628 = vpop.permute.xlu0 %627
        %630 = vset.pattern.permute.xlu0 2
        %631 = vperm.xlu0 %630, %v290
        %v632 = vpop.permute.xlu0 %631
        %634 = vset.pattern.permute.xlu0 2
        %635 = vperm.xlu0 %634, %v291
        %v636 = vpop.permute.xlu0 %635
        %638 = vset.pattern.permute.xlu0 2
        %639 = vperm.xlu0 %638, %v292
        %v640 = vpop.permute.xlu0 %639
        %642 = vset.pattern.permute.xlu0 2
        %643 = vperm.xlu0 %642, %v293
        %v644 = vpop.permute.xlu0 %643
        %646 = vset.pattern.permute.xlu0 2
        %647 = vperm.xlu0 %646, %v294
        %v648 = vpop.permute.xlu0 %647
        %650 = vset.pattern.permute.xlu0 2
        %651 = vperm.xlu0 %650, %v295
        %v652 = vpop.permute.xlu0 %651
        %654 = vset.pattern.permute.xlu0 2
        %655 = vperm.xlu0 %654, %v296
        %v656 = vpop.permute.xlu0 %655
        %658 = vset.pattern.permute.xlu0 2
        %659 = vperm.xlu0 %658, %v297
        %v660 = vpop.permute.xlu0 %659
        %662 = vset.pattern.permute.xlu0 2
        %663 = vperm.xlu0 %662, %v298
        %v664 = vpop.permute.xlu0 %663
        %666 = vset.pattern.permute.xlu0 2
        %667 = vperm.xlu0 %666, %v299
        %v668 = vpop.permute.xlu0 %667
        %670 = vset.pattern.permute.xlu0 2
        %671 = vperm.xlu0 %670, %v300
        %v672 = vpop.permute.xlu0 %671
        %674 = vset.pattern.permute.xlu0 2
        %675 = vperm.xlu0 %674, %v301
        %v676 = vpop.permute.xlu0 %675
        %v678 = vlaneseq
        %v679 = vshrl.u32 %v678, 7
        %v680 = vsub.s32 2, %v679
        %v681 = vrot.slane %v285, %v680
        %v682 = vmul.f32 %v616, %v681
        %v683 = vmul.f32 %v620, %v681
        %v684 = vmul.f32 %v624, %v681
        %v685 = vmul.f32 %v628, %v681
        %v686 = vmul.f32 %v632, %v681
        %v687 = vmul.f32 %v636, %v681
        %v688 = vmul.f32 %v640, %v681
        %v689 = vmul.f32 %v644, %v681
        %v690 = vmul.f32 %v648, %v681
        %v691 = vmul.f32 %v652, %v681
        %v692 = vmul.f32 %v656, %v681
        %v693 = vmul.f32 %v660, %v681
        %v694 = vmul.f32 %v664, %v681
        %v695 = vmul.f32 %v668, %v681
        %v696 = vmul.f32 %v672, %v681
        %v697 = vmul.f32 %v676, %v681
        %v698 = vadd.f32 %v598, %v682
        %v699 = vadd.f32 %v599, %v683
        %v700 = vadd.f32 %v600, %v684
        %v701 = vadd.f32 %v601, %v685
        %v702 = vadd.f32 %v602, %v686
        %v703 = vadd.f32 %v603, %v687
        %v704 = vadd.f32 %v604, %v688
        %v705 = vadd.f32 %v605, %v689
        %v706 = vadd.f32 %v606, %v690
        %v707 = vadd.f32 %v607, %v691
        %v708 = vadd.f32 %v608, %v692
        %v709 = vadd.f32 %v609, %v693
        %v710 = vadd.f32 %v610, %v694
        %v711 = vadd.f32 %v611, %v695
        %v712 = vadd.f32 %v612, %v696
        %v713 = vadd.f32 %v613, %v697
        %714 = vset.pattern.permute.xlu0 3
        %715 = vperm.xlu0 %714, %v286
        %v716 = vpop.permute.xlu0 %715
        %718 = vset.pattern.permute.xlu0 3
        %719 = vperm.xlu0 %718, %v287
        %v720 = vpop.permute.xlu0 %719
        %722 = vset.pattern.permute.xlu0 3
        %723 = vperm.xlu0 %722, %v288
        %v724 = vpop.permute.xlu0 %723
        %726 = vset.pattern.permute.xlu0 3
        %727 = vperm.xlu0 %726, %v289
        %v728 = vpop.permute.xlu0 %727
        %730 = vset.pattern.permute.xlu0 3
        %731 = vperm.xlu0 %730, %v290
        %v732 = vpop.permute.xlu0 %731
        %734 = vset.pattern.permute.xlu0 3
        %735 = vperm.xlu0 %734, %v291
        %v736 = vpop.permute.xlu0 %735
        %738 = vset.pattern.permute.xlu0 3
        %739 = vperm.xlu0 %738, %v292
        %v740 = vpop.permute.xlu0 %739
        %742 = vset.pattern.permute.xlu0 3
        %743 = vperm.xlu0 %742, %v293
        %v744 = vpop.permute.xlu0 %743
        %746 = vset.pattern.permute.xlu0 3
        %747 = vperm.xlu0 %746, %v294
        %v748 = vpop.permute.xlu0 %747
        %750 = vset.pattern.permute.xlu0 3
        %751 = vperm.xlu0 %750, %v295
        %v752 = vpop.permute.xlu0 %751
        %754 = vset.pattern.permute.xlu0 3
        %755 = vperm.xlu0 %754, %v296
        %v756 = vpop.permute.xlu0 %755
        %758 = vset.pattern.permute.xlu0 3
        %759 = vperm.xlu0 %758, %v297
        %v760 = vpop.permute.xlu0 %759
        %762 = vset.pattern.permute.xlu0 3
        %763 = vperm.xlu0 %762, %v298
        %v764 = vpop.permute.xlu0 %763
        %766 = vset.pattern.permute.xlu0 3
        %767 = vperm.xlu0 %766, %v299
        %v768 = vpop.permute.xlu0 %767
        %770 = vset.pattern.permute.xlu0 3
        %771 = vperm.xlu0 %770, %v300
        %v772 = vpop.permute.xlu0 %771
        %774 = vset.pattern.permute.xlu0 3
        %775 = vperm.xlu0 %774, %v301
        %v776 = vpop.permute.xlu0 %775
        %v778 = vlaneseq
        %v779 = vshrl.u32 %v778, 7
        %v780 = vsub.s32 3, %v779
        %v781 = vrot.slane %v285, %v780
        %v782 = vmul.f32 %v716, %v781
        %v783 = vmul.f32 %v720, %v781
        %v784 = vmul.f32 %v724, %v781
        %v785 = vmul.f32 %v728, %v781
        %v786 = vmul.f32 %v732, %v781
        %v787 = vmul.f32 %v736, %v781
        %v788 = vmul.f32 %v740, %v781
        %v789 = vmul.f32 %v744, %v781
        %v790 = vmul.f32 %v748, %v781
        %v791 = vmul.f32 %v752, %v781
        %v792 = vmul.f32 %v756, %v781
        %v793 = vmul.f32 %v760, %v781
        %v794 = vmul.f32 %v764, %v781
        %v795 = vmul.f32 %v768, %v781
        %v796 = vmul.f32 %v772, %v781
        %v797 = vmul.f32 %v776, %v781
        %v798 = vadd.f32 %v698, %v782
        %v799 = vadd.f32 %v699, %v783
        %v800 = vadd.f32 %v700, %v784
        %v801 = vadd.f32 %v701, %v785
        %v802 = vadd.f32 %v702, %v786
        %v803 = vadd.f32 %v703, %v787
        %v804 = vadd.f32 %v704, %v788
        %v805 = vadd.f32 %v705, %v789
        %v806 = vadd.f32 %v706, %v790
        %v807 = vadd.f32 %v707, %v791
        %v808 = vadd.f32 %v708, %v792
        %v809 = vadd.f32 %v709, %v793
        %v810 = vadd.f32 %v710, %v794
        %v811 = vadd.f32 %v711, %v795
        %v812 = vadd.f32 %v712, %v796
        %v813 = vadd.f32 %v713, %v797
        %v814 = vmax.f32 %v798, 0.0
        %v815 = vmax.f32 %v799, 0.0
        %v816 = vmax.f32 %v800, 0.0
        %v817 = vmax.f32 %v801, 0.0
        %v818 = vmax.f32 %v802, 0.0
        %v819 = vmax.f32 %v803, 0.0
        %v820 = vmax.f32 %v804, 0.0
        %v821 = vmax.f32 %v805, 0.0
        %v822 = vmax.f32 %v806, 0.0
        %v823 = vmax.f32 %v807, 0.0
        %v824 = vmax.f32 %v808, 0.0
        %v825 = vmax.f32 %v809, 0.0
        %v826 = vmax.f32 %v810, 0.0
        %v827 = vmax.f32 %v811, 0.0
        %v828 = vmax.f32 %v812, 0.0
        %v829 = vmax.f32 %v813, 0.0
        %v830 = vld [vmem:[#allocation9] sm:$0xff]
        %v831 = vld [vmem:[#allocation9 + $0x8] sm:$0xff]
        %v832 = vld [vmem:[#allocation9 + $0x10] sm:$0xff]
        %v833 = vld [vmem:[#allocation9 + $0x18] sm:$0xff]
        %v834 = vld [vmem:[#allocation9 + $0x20] sm:$0xff]
        %v835 = vld [vmem:[#allocation9 + $0x28] sm:$0xff]
        %v836 = vld [vmem:[#allocation9 + $0x30] sm:$0xff]
        %v837 = vld [vmem:[#allocation9 + $0x38] sm:$0xff]
        %v838 = vld [vmem:[#allocation9 + $0x40] sm:$0xff]
        %v839 = vld [vmem:[#allocation9 + $0x48] sm:$0xff]
        %v840 = vld [vmem:[#allocation9 + $0x50] sm:$0xff]
        %v841 = vld [vmem:[#allocation9 + $0x58] sm:$0xff]
        %v842 = vld [vmem:[#allocation9 + $0x60] sm:$0xff]
        %v843 = vld [vmem:[#allocation9 + $0x68] sm:$0xff]
        %v844 = vld [vmem:[#allocation9 + $0x70] sm:$0xff]
        %v845 = vld [vmem:[#allocation9 + $0x78] sm:$0xff]
        %847 = vset.pattern.permute.xlu0 0
        %848 = vperm.xlu0 %847, %v830
        %v849 = vpop.permute.xlu0 %848
        %852 = vset.pattern.permute.xlu0 0
        %853 = vperm.xlu0 %852, %v831
        %v854 = vpop.permute.xlu0 %853
        %857 = vset.pattern.permute.xlu0 0
        %858 = vperm.xlu0 %857, %v832
        %v859 = vpop.permute.xlu0 %858
        %862 = vset.pattern.permute.xlu0 0
        %863 = vperm.xlu0 %862, %v833
        %v864 = vpop.permute.xlu0 %863
        %867 = vset.pattern.permute.xlu0 0
        %868 = vperm.xlu0 %867, %v834
        %v869 = vpop.permute.xlu0 %868
        %872 = vset.pattern.permute.xlu0 0
        %873 = vperm.xlu0 %872, %v835
        %v874 = vpop.permute.xlu0 %873
        %877 = vset.pattern.permute.xlu0 0
        %878 = vperm.xlu0 %877, %v836
        %v879 = vpop.permute.xlu0 %878
        %882 = vset.pattern.permute.xlu0 0
        %883 = vperm.xlu0 %882, %v837
        %v884 = vpop.permute.xlu0 %883
        %887 = vset.pattern.permute.xlu0 0
        %888 = vperm.xlu0 %887, %v838
        %v889 = vpop.permute.xlu0 %888
        %892 = vset.pattern.permute.xlu0 0
        %893 = vperm.xlu0 %892, %v839
        %v894 = vpop.permute.xlu0 %893
        %897 = vset.pattern.permute.xlu0 0
        %898 = vperm.xlu0 %897, %v840
        %v899 = vpop.permute.xlu0 %898
        %902 = vset.pattern.permute.xlu0 0
        %903 = vperm.xlu0 %902, %v841
        %v904 = vpop.permute.xlu0 %903
        %907 = vset.pattern.permute.xlu0 0
        %908 = vperm.xlu0 %907, %v842
        %v909 = vpop.permute.xlu0 %908
        %912 = vset.pattern.permute.xlu0 0
        %913 = vperm.xlu0 %912, %v843
        %v914 = vpop.permute.xlu0 %913
        %917 = vset.pattern.permute.xlu0 0
        %918 = vperm.xlu0 %917, %v844
        %v919 = vpop.permute.xlu0 %918
        %922 = vset.pattern.permute.xlu0 0
        %923 = vperm.xlu0 %922, %v845
        %v924 = vpop.permute.xlu0 %923
        %v926 = vmul.f32 %v814, %v849
        %v927 = vmul.f32 %v815, %v854
        %v928 = vmul.f32 %v816, %v859
        %v929 = vmul.f32 %v817, %v864
        %v930 = vmul.f32 %v818, %v869
        %v931 = vmul.f32 %v819, %v874
        %v932 = vmul.f32 %v820, %v879
        %v933 = vmul.f32 %v821, %v884
        %v934 = vmul.f32 %v822, %v889
        %v935 = vmul.f32 %v823, %v894
        %v936 = vmul.f32 %v824, %v899
        %v937 = vmul.f32 %v825, %v904
        %v938 = vmul.f32 %v826, %v909
        %v939 = vmul.f32 %v827, %v914
        %v940 = vmul.f32 %v828, %v919
        %v941 = vmul.f32 %v829, %v924
        %v942 = vadd.f32 %v926, %v927
        %v943 = vadd.f32 %v942, %v928
        %v944 = vadd.f32 %v943, %v929
        %v945 = vadd.f32 %v944, %v930
        %v946 = vadd.f32 %v945, %v931
        %v947 = vadd.f32 %v946, %v932
        %v948 = vadd.f32 %v947, %v933
        %v949 = vadd.f32 %v948, %v934
        %v950 = vadd.f32 %v949, %v935
        %v951 = vadd.f32 %v950, %v936
        %v952 = vadd.f32 %v951, %v937
        %v953 = vadd.f32 %v952, %v938
        %v954 = vadd.f32 %v953, %v939
        %v955 = vadd.f32 %v954, %v940
        %v956 = vadd.f32 %v955, %v941
        %v957 = vrot.slane %v956, 4
        %v958 = vadd.f32 %v956, %v957
        %v959 = vrot.slane %v958, 2
        %v960 = vadd.f32 %v958, %v959
        %v961 = vrot.slane %v960, 1
        %v962 = vadd.f32 %v960, %v961
        %s963 = sld [smem:[#allocation2]]
        %v964 = vstv %s963
        %v965 = vadd.f32 %v962, %v964
        %v966 = vxor.u32 %v965, 2147483648
        %v967 = vmul.f32 %v966, 1.442695
        %v968 = vpow.pop %v967
        %v969 = vadd.f32 %v968, 1.0
        %v970 = vrcp.pop %v969
        %v971 = vmul.f32 1.0, %v970
        %v972 = vsub.f32 0.0, %v965
        %v973 = vxor.u32 %v972, 2147483648
        %v974 = vmul.f32 %v973, 1.442695
        %v975 = vpow.pop %v974
        %v976 = vadd.f32 %v975, 1.0
        %v977 = vrcp.pop %v976
        %v978 = vmul.f32 1.0, %v977
        %979 = vst [vmem:[%s284] sm:$0x1] %v978
        %980 = vst [vmem:[%s284 + $0x1] sm:$0x1] %v971
        %s981 = sand.u32 %s143, 1
        %s982 = scalar_lea.sflag [#allocation5], %s981
        %s983 = sand.u32 %s143, 1
        %s984 = smul.addr %s983, 2
        %s985 = scalar_lea.vmem [#allocation11], %s984
        // Predicated region
        $region57: #{forward.1} parent=39 // pred_check
          %p986 = pneg %p153
        $region58: #{forward.1} parent=39 // pred_check_branch
          %988 = sbr.rel (%p986) target = $region60
        $region59: #{forward.1} parent=39 // pred_region
          %s990 = ssub.s32 32, 32
          %991 = vsyncadd %s982, %s990
          %s992 = smul.addr %s25, 32
          %s993 = scalar_lea.hbm %s5, %s992
          %s995 = sshll.u32 %s985, 4
          %s996 = int_to_ptr.vmem [resolvable:$true] %s995
          %998 = dma.vmem_to_hbm [thread:$0]  %s996, 32, %s993, %s982
        $region60: #{forward.1} parent=39 // pred_fallthru
          _
      $region40: #{forward.1} parent=5 // pred_fallthru
        _
      %p999 = scmp.le.s32.totalorder 2, %s20
      // Predicated region
      $region61: #{forward.1} parent=5 // pred_check
        %p1000 = pneg %p999
      $region62: #{forward.1} parent=5 // pred_check_branch
        %1002 = sbr.rel (%p1000) target = $region64
      $region63: #{forward.1} parent=5 // pred_region
        %s1003 = ssub.s32 %s20, 2
        // Predicated region
        $region65: #{forward.1} parent=63 // pred_check
          %p1004 = pneg %p159
        $region66: #{forward.1} parent=63 // pred_check_branch
          %1006 = sbr.rel (%p1004) target = $region68
        $region67: #{forward.1} parent=63 // pred_region
          %s1007 = sand.u32 %s144, 1
          %s1008 = scalar_lea.sflag [#allocation5], %s1007
          %s1009 = sand.u32 %s144, 1
          %s1010 = smul.addr %s1009, 2
          %s1011 = scalar_lea.vmem [#allocation11], %s1010
          %1012 = dma.done %s1008, 32
        $region68: #{forward.1} parent=63 // pred_fallthru
          _
      $region64: #{forward.1} parent=5 // pred_fallthru
        _
    $region6: #{forward.1} parent=1 // loop_footer
      %s24 = sadd.s32 1, %s20
    $region7: #{forward.1} parent=1 // loop_footer_branch
      %19 = sbr.rel target = $region3
    $region8: #{forward.1} parent=1 // loop_exit
      _
    %1013 = vsyncpa [#allocation4], 1
    %s1014 = scalar_lea.sflag [#allocation4], 1
    %1015 = vsyncpa %s1014, 1
    %1016 = vsyncpa [#allocation7], 1
    %1017 = vsyncpa [#allocation10], 1
    %1018 = vsyncpa [#allocation5], 1
    %s1019 = scalar_lea.sflag [#allocation5], 1
    %1020 = vsyncpa %s1019, 1

</llo_original>
